<compile_context>
chip_gen: v7x
topology: tpu7x:2x2x1
jax: 0.10.0
libtpu: 0.0.40
codegen_flags: <defaults>
</compile_context>

<pallas_src>
import functools

import jax
import jax.numpy as jnp
from jax.experimental import pallas as pl
from jax.experimental.pallas import tpu as pltpu

_LANE = 128
_SUBLANE = 8


def _round_down(x, m):
    return max((x // m) * m, m)


def _choose_tiles(M, K, D, x_bytes, w_bytes, o_bytes):
    """Pick (tm, tk, nk, vmem_limit_bytes) from a generation-aware VMEM budget."""
    try:
        vmem_cap = int(pltpu.get_tpu_info().vmem_capacity_bytes)
    except Exception:  # conservative fallback: v7x per-TensorCore VMEM
        vmem_cap = 64 * 1024 * 1024
    budget = int(vmem_cap * 0.4)

    # ---- K tile: stay weight-resident (nk == 1) whenever the double-buffered
    # (K, D) weight block fits comfortably; otherwise block K with an exact
    # divisor (multiples of 256 preferred) so the accumulator never sees
    # out-of-bounds columns.
    def w_blk(tk):
        return 2 * tk * D * w_bytes

    tk = K
    if w_blk(K) > budget // 2:
        for cand in (2048, 1024, 512, 256, 128):
            if K % cand == 0 and w_blk(cand) <= budget // 2:
                tk = cand
                break
        else:
            tk = K  # no legal divisor fits: keep resident, let the limit grow
    nk = K // tk

    # ---- M tile: VMEM-derived, but capped so the M grid keeps >= ~4 steps
    # (megacore sharding + DMA/compute pipelining).
    fixed = w_blk(tk) + 2 * D * 4                  # weight blocks + (tiny) bias
    per_tm = 2 * tk * x_bytes + 2 * D * o_bytes    # double-buffered x + out rows
    if nk > 1:
        per_tm += D * 4                            # f32 accumulator scratch row
    avail = budget - fixed
    tm_vmem = max(avail // per_tm, _SUBLANE) if avail > 0 else _SUBLANE
    tm_grid = max(pl.cdiv(M, 4), 2 * _SUBLANE)     # keep nm >= ~4 when M allows
    tm = max(_SUBLANE, min(tm_vmem, tm_grid, 1024))
    if tm >= 16:
        tm = _round_down(tm, 16)                   # bf16 sublane pack
    if tm >= M:
        tm = M                                     # truly tiny M: single block

    needed = fixed + per_tm * tm
    vmem_limit = min(vmem_cap, max(32 * 1024 * 1024, int(needed) + (8 << 20)))
    return int(tm), int(tk), int(nk), int(vmem_limit)


def _patch_embed_kernel_resident(x_ref, w_ref, b_ref, o_ref):
    # Weight fully resident (nk == 1): one MXU pass straight to the output,
    # no accumulator VMEM round-trips.
    # x_ref: (tm, K) bf16   w_ref: (K, D) bf16   b_ref: (1, D) f32   o_ref: (tm, D)
    o_ref[...] = (jnp.dot(x_ref[...], w_ref[...],
                          preferred_element_type=jnp.float32)
                  + b_ref[...]).astype(o_ref.dtype)


def _patch_embed_kernel_blocked_k(x_ref, w_ref, b_ref, o_ref, acc_ref):
    # K-blocked path (weight too large for VMEM): f32 accumulator + init/finalize.
    @pl.when(pl.program_id(1) == 0)
    def _():
        acc_ref[...] = jnp.zeros_like(acc_ref)

    acc_ref[...] += jnp.dot(x_ref[...], w_ref[...],
                            preferred_element_type=jnp.float32)

    @pl.when(pl.program_id(1) == pl.num_programs(1) - 1)
    def _():
        o_ref[...] = (acc_ref[...] + b_ref[...]).astype(o_ref.dtype)


def _patch_matmul(x_p, w, b, *, out_dtype):
    """x_p: (M, K) bf16 patches, w: (K, D) bf16, b: (1, D) f32 -> (M, D)."""
    M, K = x_p.shape
    _, D = w.shape
    o_bytes = jnp.dtype(out_dtype).itemsize
    tm, tk, nk, vmem_limit = _choose_tiles(
        M, K, D, x_p.dtype.itemsize, w.dtype.itemsize, o_bytes)
    nm = pl.cdiv(M, tm)

    # Advisory cost: include the weight re-stream when K is blocked (the (k,0)
    # index_map re-DMAs the whole weight once per M tile).
    w_stream = K * D * w.dtype.itemsize * (nm if nk > 1 else 1)
    cost = pl.CostEstimate(
        flops=2 * M * K * D,
        transcendentals=0,
        bytes_accessed=(M * K * x_p.dtype.itemsize + w_stream + D * 4
                        + M * D * o_bytes),
    )

    if nk == 1:
        grid_spec = pltpu.PrefetchScalarGridSpec(
            num_scalar_prefetch=0,
            grid=(nm,),
            in_specs=[
                pl.BlockSpec((tm, K), lambda i: (i, 0)),
                pl.BlockSpec((K, D), lambda i: (0, 0)),
                pl.BlockSpec((1, D), lambda i: (0, 0)),
            ],
            out_specs=pl.BlockSpec((tm, D), lambda i: (i, 0)),
        )
        kernel = _patch_embed_kernel_resident
        dims = ("parallel",)
    else:
        grid_spec = pltpu.PrefetchScalarGridSpec(
            num_scalar_prefetch=0,
            grid=(nm, nk),
            in_specs=[
                pl.BlockSpec((tm, tk), lambda i, k: (i, k)),
                pl.BlockSpec((tk, D), lambda i, k: (k, 0)),
                pl.BlockSpec((1, D), lambda i, k: (0, 0)),
            ],
            out_specs=pl.BlockSpec((tm, D), lambda i, k: (i, 0)),
            scratch_shapes=[pltpu.VMEM((tm, D), jnp.float32)],
        )
        kernel = _patch_embed_kernel_blocked_k
        dims = ("parallel", "arbitrary")

    return pl.pallas_call(
        kernel,
        out_shape=jax.ShapeDtypeStruct((M, D), out_dtype),
        grid_spec=grid_spec,
        compiler_params=pltpu.CompilerParams(
            dimension_semantics=dims,
            vmem_limit_bytes=vmem_limit,
        ),
        cost_estimate=cost,
    )(x_p, w, b)


def patch_embedding_3d(x, weight, bias, patch_size, *, out_dtype=None):
    """Forward pass of PatchEmbedding3d.

    x:      (B, C, T, H, W)        -- PyTorch NCDHW layout
    weight: (D, C, pt, ph, pw)     -- Conv3d weight layout
    bias:   (D,)
    returns (B, nt*nh*nw, D), dtype out_dtype (defaults to x.dtype)
    """
    pt, ph, pw = patch_size
    B, C, T, H, W = x.shape
    D = weight.shape[0]
    nt, nh, nw = T // pt, H // ph, W // pw
    K = C * pt * ph * pw
    M = B * nt * nh * nw
    out_dtype = x.dtype if out_dtype is None else out_dtype

    # bf16 stream for the MXU (accumulation stays f32 inside the kernel); the
    # cast fuses into the patch-extraction copy below, halving its HBM writes.
    x_lo = x.astype(jnp.bfloat16)

    # Patch extraction (layout glue): (B,C,nt,pt,nh,ph,nw,pw) ->
    # (B,nt,nh,nw,C,pt,ph,pw) -> (M, K).  Row order matches the module's
    # 'b d nt nh nw -> b (nt nh nw) d' rearrange; K order (C,pt,ph,pw) matches
    # the Conv3d weight flattening below.
    # TODO(synk): for very large inputs, fuse this gather into the kernel
    # (memory_space=pl.ANY + per-patch-row DMA of (C,pt,ph,W) slabs) to remove
    # one full HBM pass; kept in XLA here since it needs lane-hostile
    # in-kernel relayouts for small patch widths.
    xp = x_lo.reshape(B, C, nt, pt, nh, ph, nw, pw)
    xp = jnp.transpose(xp, (0, 2, 4, 6, 1, 3, 5, 7))
    xp = xp.reshape(M, K)

    # Conv weight -> (K, D) with contraction order (C, pt, ph, pw).  No lane
    # padding: full-extent D is always a legal block last-dim, and the kernel
    # then writes only the true M*D output bytes (no post-slice pass).
    w2d = weight.reshape(D, K).T.astype(jnp.bfloat16)
    b2d = bias.reshape(1, D).astype(jnp.float32)

    out = _patch_matmul(xp, w2d, b2d, out_dtype=out_dtype)  # (M, D)
    return out.reshape(B, nt * nh * nw, D)


def _reference(x, weight, bias, patch_size):
    pt, ph, pw = patch_size
    B, C, T, H, W = x.shape
    D = weight.shape[0]
    nt, nh, nw = T // pt, H // ph, W // pw
    xp = x.reshape(B, C, nt, pt, nh, ph, nw, pw)
    xp = jnp.transpose(xp, (0, 2, 4, 6, 1, 3, 5, 7)).reshape(B * nt * nh * nw, -1)
    return (xp @ weight.reshape(D, -1).T + bias).reshape(B, nt * nh * nw, D)


if __name__ == "__main__":
    patch_size = (2, 4, 4)
    D = 32
    key = jax.random.PRNGKey(0)

    fwd = jax.jit(functools.partial(patch_embedding_3d, patch_size=patch_size))

    # Config 1: small shapes consistent with the module (C=4, T=8, H=W=16,
    # patch (2,4,4), D=32, B=2) -> M=128, tm divides M evenly.
    # Config 2: B=3, W=12 -> M=144, tm does NOT divide M (exercises the
    # masked remainder tile along the parallel M axis).
    configs = [(2, 4, 8, 16, 16), (3, 4, 8, 16, 12)]
    for (B, C, T, H, W) in configs:
        key, kx, kw, kb = jax.random.split(key, 4)
        x = jax.random.normal(kx, (B, C, T, H, W), dtype=jnp.float32)
        weight = jax.random.normal(kw, (D, C, *patch_size), dtype=jnp.float32) * 0.02
        bias = jax.random.normal(kb, (D,), dtype=jnp.float32) * 0.01

        out = jax.block_until_ready(fwd(x, weight, bias))

        pt, ph, pw = patch_size
        nt, nh, nw = T // pt, H // ph, W // pw
        ref = _reference(x, weight, bias, patch_size)

        assert out.shape == (B, nt * nh * nw, D), out.shape
        assert out.dtype == x.dtype, out.dtype
        # bf16 activation/weight stream in the kernel -> relaxed tolerance.
        assert jnp.allclose(out, ref, atol=2e-2, rtol=2e-2)

    print("KERNEL_OK")
</pallas_src>

<mosaic_0001>
module attributes {stable_mosaic.version = 11 : i64} {
  func.func @_patch_embed_kernel_resident(%arg0: i32, %arg1: memref<32x128xbf16, #tpu.memory_space<vmem>>, %arg2: memref<128x32xbf16, #tpu.memory_space<vmem>>, %arg3: memref<1x32xf32, #tpu.memory_space<vmem>>, %arg4: memref<32x32xf32, #tpu.memory_space<vmem>>) attributes {dimension_semantics = [#tpu.dimension_semantics<parallel>], iteration_bounds = array<i64: 4>, scalar_prefetch = 0 : i64, scratch_operands = 0 : i64, tpu.core_type = #tpu.core_type<tc>, window_params = [{transform_indices = @transform_0, window_bounds = array<i64: 32, 128>}, {pipeline_mode = #tpu.pipeline_mode<synchronous>, transform_indices = @transform_1, window_bounds = array<i64: 128, 32>}, {pipeline_mode = #tpu.pipeline_mode<synchronous>, transform_indices = @transform_2, window_bounds = array<i64: 1, 32>}, {transform_indices = @transform_3, window_bounds = array<i64: 32, 32>}]} {
    %c0 = arith.constant 0 : index
    %c0_0 = arith.constant 0 : index
    %0 = vector.load %arg1[%c0, %c0_0] : memref<32x128xbf16, #tpu.memory_space<vmem>>, vector<32x128xbf16>
    %c0_1 = arith.constant 0 : index
    %c0_2 = arith.constant 0 : index
    %1 = vector.load %arg2[%c0_1, %c0_2] : memref<128x32xbf16, #tpu.memory_space<vmem>>, vector<128x32xbf16>
    %cst = arith.constant dense<0.000000e+00> : vector<32x32xf32>
    %2 = tpu.matmul %0, %1, %cst {dimension_numbers = #tpu.dot_dimension_numbers<[1], [0], [0], [1], [0, 0, 1, 1], [], []>} : vector<32x128xbf16>, vector<128x32xbf16>, vector<32x32xf32> -> vector<32x32xf32>
    %c0_3 = arith.constant 0 : index
    %c0_4 = arith.constant 0 : index
    %3 = vector.load %arg3[%c0_3, %c0_4] : memref<1x32xf32, #tpu.memory_space<vmem>>, vector<1x32xf32>
    %4 = vector.broadcast %3 : vector<1x32xf32> to vector<32x32xf32>
    %5 = arith.addf %2, %4 : vector<32x32xf32>
    %c0_5 = arith.constant 0 : index
    %c0_6 = arith.constant 0 : index
    %6 = vector.load %arg4[%c0_5, %c0_6] : memref<32x32xf32, #tpu.memory_space<vmem>>, vector<32x32xf32>
    tpu.vector_store %arg4[%c0_5, %c0_6], %5 {strides = array<i32>} : memref<32x32xf32, #tpu.memory_space<vmem>>, vector<32x32xf32>,
    return
  }
  func.func @transform_0(%arg0: i32) -> (i32, i32) {
    %c0_i32 = arith.constant 0 : i32
    %c0_i32_0 = arith.constant 0 : i32
    return %arg0, %c0_i32 : i32, i32
  }
  func.func @transform_1(%arg0: i32) -> (i32, i32) {
    %c0_i32 = arith.constant 0 : i32
    %c0_i32_0 = arith.constant 0 : i32
    %c0_i32_1 = arith.constant 0 : i32
    return %c0_i32, %c0_i32_0 : i32, i32
  }
  func.func @transform_2(%arg0: i32) -> (i32, i32) {
    %c0_i32 = arith.constant 0 : i32
    %c0_i32_0 = arith.constant 0 : i32
    %c0_i32_1 = arith.constant 0 : i32
    return %c0_i32, %c0_i32_0 : i32, i32
  }
  func.func @transform_3(%arg0: i32) -> (i32, i32) {
    %c0_i32 = arith.constant 0 : i32
    %c0_i32_0 = arith.constant 0 : i32
    return %arg0, %c0_i32 : i32, i32
  }
}

</mosaic_0001>

<llo_original>
// kernel: patch_embedding_3d.1
$region0: #{patch_embedding_3d.1}
  #allocation0 [shape = 'u32[]', space=smem, size = 0x4, offset = 0x4, fixed_abs, tag = 'smem constant byte address 0x4 - core index']
  #allocation1 [shape = 'u32[144,128]{1,0:T(1,128)}', space=vmem, size = 0x12000, scoped, tag = 'internal scratch']
  %s0 = inlined_call_operand.vmem [shape: bf16[128,128], index: 0, kind: input, shape index: {}]
  %s1 = inlined_call_operand.vmem [shape: bf16[128,32], index: 1, kind: input, shape index: {}]
  %s2 = inlined_call_operand.vmem [shape: f32[1,32], index: 2, kind: input, shape index: {}]
  %s3 = inlined_call_operand.vmem [shape: f32[128,32], index: 3, kind: output, shape index: {}]
  %s4 = sld [smem:[#allocation0]]
  $region45: #{patch_embedding_3d.1} parent=0
    _
  %s6 = ssub.s32 1, %s4
  %s7 = scalar_select 0, %s6, %s4
  loop: start=0, step=1, limit=6
  $region2: #{patch_embedding_3d.1} parent=0 // loop_pre_header
    _
  $region3: #{patch_embedding_3d.1} parent=0 // loop_header
    %s9 = sphi 0, %s13
    %p10 = scmp.ge.s32.totalorder %s9, 6
    %s19 = sphi 0, %s21
    %s22 = sphi 0, %s19
    %s23 = sphi 0, %s22
    %s39 = sphi 0, %s23
    %s43 = sphi 0, %s43
    %s45 = sphi 0, %s43
    %s46 = sphi 0, %s45
    %s60 = sphi 0, %s46
    %s64 = sphi 0, %s64
    %s66 = sphi 0, %s64
    %s67 = sphi 0, %s66
    %s81 = sphi 0, %s67
    %s87 = sphi 0, %s89
    %s90 = sphi 0, %s87
    %s91 = sphi 0, %s90
    %s107 = sphi 0, %s91
  $region4: #{patch_embedding_3d.1} parent=0 // loop_header_branch
    %12 = sbr.rel (%p10) target = $region8
  $region5: #{patch_embedding_3d.1} parent=0 // loop_body
    %s14 = ssub.s32 %s9, 1
    %s15 = ssub.s32 %s9, 2
    %s16 = sadd.s32 %s9, 1
    %s17 = ssub.s32 %s9, %s16
    %p18 = scmp.eq.s32.totalorder %s17, 0
    %s20 = sadd.s32 %s19, 1
    %s21 = scalar_select %p18, %s19, %s20
    %p24 = pneg %p18
    %p25 = scmp.eq.s32.totalorder %s9, 3
    %p26 = por %p24, %p25
    %p27 = scmp.ne.s32.totalorder %s19, %s22
    %p28 = scmp.eq.s32.totalorder %s9, 0
    %p29 = por %p27, %p28
    %p30 = scmp.ne.s32.totalorder %s19, %s22
    %p31 = scmp.eq.s32.totalorder %s14, 3
    %p32 = por %p30, %p31
    %p33 = scmp.ne.s32.totalorder %s22, %s23
    %p34 = scmp.eq.s32.totalorder %s14, 0
    %p35 = por %p33, %p34
    %p36 = scmp.ne.s32.totalorder %s22, %s23
    %p37 = scmp.eq.s32.totalorder %s15, 3
    %p38 = por %p36, %p37
    %p40 = scmp.ne.s32.totalorder %s23, %s39
    %p41 = scmp.eq.s32.totalorder %s15, 0
    %p42 = por %p40, %p41
    %s44 = sadd.s32 %s43, 1
    %p47 = scmp.eq.s32.totalorder %s9, 3
    %p48 = scmp.ne.s32.totalorder %s43, %s45
    %p49 = scmp.eq.s32.totalorder %s9, 0
    %p50 = por %p48, %p49
    %p51 = scmp.ne.s32.totalorder %s43, %s45
    %p52 = scmp.eq.s32.totalorder %s14, 3
    %p53 = por %p51, %p52
    %p54 = scmp.ne.s32.totalorder %s45, %s46
    %p55 = scmp.eq.s32.totalorder %s14, 0
    %p56 = por %p54, %p55
    %p57 = scmp.ne.s32.totalorder %s45, %s46
    %p58 = scmp.eq.s32.totalorder %s15, 3
    %p59 = por %p57, %p58
    %p61 = scmp.ne.s32.totalorder %s46, %s60
    %p62 = scmp.eq.s32.totalorder %s15, 0
    %p63 = por %p61, %p62
    %s65 = sadd.s32 %s64, 1
    %p68 = scmp.eq.s32.totalorder %s9, 3
    %p69 = scmp.ne.s32.totalorder %s64, %s66
    %p70 = scmp.eq.s32.totalorder %s9, 0
    %p71 = por %p69, %p70
    %p72 = scmp.ne.s32.totalorder %s64, %s66
    %p73 = scmp.eq.s32.totalorder %s14, 3
    %p74 = por %p72, %p73
    %p75 = scmp.ne.s32.totalorder %s66, %s67
    %p76 = scmp.eq.s32.totalorder %s14, 0
    %p77 = por %p75, %p76
    %p78 = scmp.ne.s32.totalorder %s66, %s67
    %p79 = scmp.eq.s32.totalorder %s15, 3
    %p80 = por %p78, %p79
    %p82 = scmp.ne.s32.totalorder %s67, %s81
    %p83 = scmp.eq.s32.totalorder %s15, 0
    %p84 = por %p82, %p83
    %s85 = ssub.s32 %s9, %s16
    %p86 = scmp.eq.s32.totalorder %s85, 0
    %s88 = sadd.s32 %s87, 1
    %s89 = scalar_select %p86, %s87, %s88
    %p92 = pneg %p86
    %p93 = scmp.eq.s32.totalorder %s9, 3
    %p94 = por %p92, %p93
    %p95 = scmp.ne.s32.totalorder %s87, %s90
    %p96 = scmp.eq.s32.totalorder %s9, 0
    %p97 = por %p95, %p96
    %p98 = scmp.ne.s32.totalorder %s87, %s90
    %p99 = scmp.eq.s32.totalorder %s14, 3
    %p100 = por %p98, %p99
    %p101 = scmp.ne.s32.totalorder %s90, %s91
    %p102 = scmp.eq.s32.totalorder %s14, 0
    %p103 = por %p101, %p102
    %p104 = scmp.ne.s32.totalorder %s90, %s91
    %p105 = scmp.eq.s32.totalorder %s15, 3
    %p106 = por %p104, %p105
    %p108 = scmp.ne.s32.totalorder %s91, %s107
    %p109 = scmp.eq.s32.totalorder %s15, 0
    %p110 = por %p108, %p109
    %p111 = scmp.le.s32.totalorder 1, %s9
    %p112 = scmp.lt.s32.totalorder %s9, 5
    %p113 = pnand %p111, %p112
    %p114 = pneg %p113
    // Predicated region
    $region9: #{patch_embedding_3d.1} parent=5 // pred_check
      _
    $region10: #{patch_embedding_3d.1} parent=5 // pred_check_branch
      %116 = sbr.rel (%p113) target = $region12
    $region11: #{patch_embedding_3d.1} parent=5 // pred_region
      %s117 = ssub.s32 %s9, 1
      // Predicated region
      $region13: #{patch_embedding_3d.1} parent=11 // pred_check
        %p118 = pneg %p56
      $region14: #{patch_embedding_3d.1} parent=11 // pred_check_branch
        %120 = sbr.rel (%p118) target = $region16
      $region15: #{patch_embedding_3d.1} parent=11 // pred_region
        _
      $region16: #{patch_embedding_3d.1} parent=11 // pred_fallthru
        _
      // Predicated region
      $region17: #{patch_embedding_3d.1} parent=11 // pred_check
        %p121 = pneg %p77
      $region18: #{patch_embedding_3d.1} parent=11 // pred_check_branch
        %123 = sbr.rel (%p121) target = $region20
      $region19: #{patch_embedding_3d.1} parent=11 // pred_region
        _
      $region20: #{patch_embedding_3d.1} parent=11 // pred_fallthru
        _
    $region12: #{patch_embedding_3d.1} parent=5 // pred_fallthru
      _
    %p124 = scmp.lt.s32.totalorder %s9, 4
    // Predicated region
    $region21: #{patch_embedding_3d.1} parent=5 // pred_check
      %p125 = pneg %p124
    $region22: #{patch_embedding_3d.1} parent=5 // pred_check_branch
      %127 = sbr.rel (%p125) target = $region24
    $region23: #{patch_embedding_3d.1} parent=5 // pred_region
      // Predicated region
      $region25: #{patch_embedding_3d.1} parent=23 // pred_check
        %p128 = pneg %p29
      $region26: #{patch_embedding_3d.1} parent=23 // pred_check_branch
        %130 = sbr.rel (%p128) target = $region28
      $region27: #{patch_embedding_3d.1} parent=23 // pred_region
        %s131 = smul.u32 4, %s9
        %p132 = scmp.lt.s32.totalorder %s131, 15
        %s133 = scalar_select %p132, %s131, 15
        %s134 = smul.addr %s133, 4
        %s135 = scalar_lea.vmem %s0, %s134
        %s136 = smul.u32 4, %s9
      $region28: #{patch_embedding_3d.1} parent=23 // pred_fallthru
        _
    $region24: #{patch_embedding_3d.1} parent=5 // pred_fallthru
      _
    %p137 = scmp.le.s32.totalorder 1, %s9
    %p138 = scmp.lt.s32.totalorder %s9, 5
    %p139 = pnand %p137, %p138
    %p140 = pneg %p139
    // Predicated region
    $region29: #{patch_embedding_3d.1} parent=5 // pred_check
      _
    $region30: #{patch_embedding_3d.1} parent=5 // pred_check_branch
      %142 = sbr.rel (%p139) target = $region32
    $region31: #{patch_embedding_3d.1} parent=5 // pred_region
      %s143 = ssub.s32 %s9, 1
      %s144 = smul.u32 4, %s14
      %p145 = scmp.lt.s32.totalorder %s144, 15
      %s146 = scalar_select %p145, %s144, 15
      %s147 = smul.addr %s146, 4
      %s148 = scalar_lea.vmem %s0, %s147
      %p149 = pneg %p35
      %p150 = pneg %p32
      %p151 = pneg %p56
      %p152 = pneg %p53
      %p153 = pneg %p77
      %p154 = pneg %p74
      %p155 = pneg %p103
      %p156 = pneg %p100
      %s157 = smul.u32 4, %s14
      %p158 = scmp.lt.s32.totalorder %s157, 15
      %s159 = scalar_select %p158, %s157, 15
      %s160 = smul.addr %s159, 8
      %s161 = scalar_lea.vmem %s3, %s160
      %s162 = smul.u32 4, %s14
      %p163 = scmp.lt.s32.totalorder %s162, 15
      %s164 = scalar_select %p163, %s162, 15
      %s165 = smul.addr %s164, 4
      %s166 = scalar_lea.vmem %s0, %s165
      %s167 = smul.u32 4, %s14
      %s168 = smul.u32 4, %s14
      %p169 = scmp.lt.s32.totalorder %s168, 15
      %s170 = scalar_select %p169, %s168, 15
      %s171 = smul.addr %s170, 8
      %s172 = scalar_lea.vmem %s3, %s171
      %s173 = smul.u32 4, %s14
      %v175 = vld [vmem:[%s166] sm:$0xf]
      %v176 = vld [vmem:[%s166 + $0x4] sm:$0xf]
      %v177 = vld [vmem:[%s166 + $0x8] sm:$0xf]
      %v178 = vld [vmem:[%s166 + $0xc] sm:$0xf]
      %v179 = vld [vmem:[%s1] sm:$0xf]
      %v180 = vld [vmem:[%s1 + $0x4] sm:$0xf]
      %v181 = vld [vmem:[%s1 + $0x8] sm:$0xf]
      %v182 = vld [vmem:[%s1 + $0xc] sm:$0xf]
      %v183 = vld [vmem:[%s1 + $0x10] sm:$0xf]
      %v184 = vld [vmem:[%s1 + $0x14] sm:$0xf]
      %v185 = vld [vmem:[%s1 + $0x18] sm:$0xf]
      %v186 = vld [vmem:[%s1 + $0x1c] sm:$0xf]
      %v187 = vld [vmem:[%s1 + $0x20] sm:$0xf]
      %v188 = vld [vmem:[%s1 + $0x24] sm:$0xf]
      %v189 = vld [vmem:[%s1 + $0x28] sm:$0xf]
      %v190 = vld [vmem:[%s1 + $0x2c] sm:$0xf]
      %v191 = vld [vmem:[%s1 + $0x30] sm:$0xf]
      %v192 = vld [vmem:[%s1 + $0x34] sm:$0xf]
      %v193 = vld [vmem:[%s1 + $0x38] sm:$0xf]
      %v194 = vld [vmem:[%s1 + $0x3c] sm:$0xf]
      %v195 = vld [vmem:[%s2] sm:$0x1]
      %v197 = vlaneseq
      %v198 = vshrl.u32 %v197, 7
      %v199 = vsub.s32 0, %v198
      %v200 = vrot.slane %v195, %v199
      %v206 = vunpack.c.l.b16 %v175
      %v207 = vunpack.c.l.b16 %v176
      %v208 = vunpack.c.l.b16 %v177
      %v209 = vunpack.c.l.b16 %v178
      %v210 = vpack.c.b16 %v207, %v206
      %v211 = vpack.c.b16 %v209, %v208
      %v230 = vunpack.c.l.b16 %v179
      %v231 = vunpack.c.l.b16 %v180
      %v232 = vunpack.c.l.b16 %v181
      %v233 = vunpack.c.l.b16 %v182
      %v234 = vunpack.c.l.b16 %v183
      %v235 = vunpack.c.l.b16 %v184
      %v236 = vunpack.c.l.b16 %v185
      %v237 = vunpack.c.l.b16 %v186
      %v238 = vunpack.c.l.b16 %v187
      %v239 = vunpack.c.l.b16 %v188
      %v240 = vunpack.c.l.b16 %v189
      %v241 = vunpack.c.l.b16 %v190
      %v242 = vunpack.c.l.b16 %v191
      %v243 = vunpack.c.l.b16 %v192
      %v244 = vunpack.c.l.b16 %v193
      %v245 = vunpack.c.l.b16 %v194
      %v246 = vpack.c.b16 %v231, %v230
      %v247 = vpack.c.b16 %v233, %v232
      %v248 = vpack.c.b16 %v235, %v234
      %v249 = vpack.c.b16 %v237, %v236
      %v250 = vpack.c.b16 %v239, %v238
      %v251 = vpack.c.b16 %v241, %v240
      %v252 = vpack.c.b16 %v243, %v242
      %v253 = vpack.c.b16 %v245, %v244
      %262 = vmatprep.subr.bf16.mxu0 0
      %263 = vmatpush1.bf16.msra.mxu0 %v246
      %264 = vmatprep.subr.bf16.mxu0 0
      %265 = vmatpush1.bf16.msra.mxu0 %v247
      %266 = vmatprep.subr.bf16.mxu0 0
      %267 = vmatpush1.bf16.msra.mxu0 %v248
      %268 = vmatprep.subr.bf16.mxu0 0
      %269 = vmatpush1.bf16.msra.mxu0 %v249
      %270 = vmatprep.subr.bf16.mxu0 0
      %271 = vmatpush1.bf16.msra.mxu0 %v250
      %272 = vmatprep.subr.bf16.mxu0 0
      %273 = vmatpush1.bf16.msra.mxu0 %v251
      %274 = vmatprep.subr.bf16.mxu0 0
      %275 = vmatpush1.bf16.msra.mxu0 %v252
      %276 = vmatprep.subr.bf16.mxu0 0
      %277 = vmatpush1.bf16.msra.mxu0 %v253
      %278 = vmatprep.subr.bf16.mxu0 0
      %279 = vmatpush1.bf16.msra.mxu0 0
      %280 = vmatprep.subr.bf16.mxu0 0
      %281 = vmatpush1.bf16.msra.mxu0 0
      %282 = vmatprep.subr.bf16.mxu0 0
      %283 = vmatpush1.bf16.msra.mxu0 0
      %284 = vmatprep.subr.bf16.mxu0 0
      %285 = vmatpush1.bf16.msra.mxu0 0
      %286 = vmatprep.subr.bf16.mxu0 0
      %287 = vmatpush1.bf16.msra.mxu0 0
      %288 = vmatprep.subr.bf16.mxu0 0
      %289 = vmatpush1.bf16.msra.mxu0 0
      %290 = vmatprep.subr.bf16.mxu0 0
      %291 = vmatpush1.bf16.msra.mxu0 0
      %292 = vmatprep.subr.bf16.mxu0 0
      %293 = vmatpush1.bf16.msra.mxu0 0
      %294 = vmatprep.mubr.bf16.mxu0 0
      %295 = vmatmul.mubr.bf16.gmra.mrb[0].mxu0 %v210
      %v296 = vpop.f32.mrb[0].mxu0
      %v297 = vadd.f32 %v200, %v296
      %v298 = vpop.f32.mrb[0].mxu0
      %v299 = vpop.f32.mrb[0].mxu0
      %v300 = vadd.f32 %v200, %v299
      %v301 = vpop.f32.mrb[0].mxu0
      %302 = vmatprep.mubr.bf16.mxu0 0
      %303 = vmatmul.mubr.bf16.gmra.mrb[0].mxu0 %v211
      %v304 = vpop.f32.mrb[0].mxu0
      %v305 = vadd.f32 %v200, %v304
      %v306 = vpop.f32.mrb[0].mxu0
      %v307 = vpop.f32.mrb[0].mxu0
      %v308 = vadd.f32 %v200, %v307
      %v309 = vpop.f32.mrb[0].mxu0
      %310 = vdwg.mxu0
      %vm311 = vcmask 261120
      %312 = vst.msk [vmem:[%s172] sm:$0xff] %vm311, %v297
      %313 = vst.msk [vmem:[%s172 + $0x8] sm:$0xff] %vm311, %v300
      %314 = vst.msk [vmem:[%s172 + $0x10] sm:$0xff] %vm311, %v305
      %315 = vst.msk [vmem:[%s172 + $0x18] sm:$0xff] %vm311, %v308
      %s316 = smul.u32 4, %s14
      %p317 = scmp.lt.s32.totalorder %s316, 15
      %s318 = scalar_select %p317, %s316, 15
      %s319 = smul.addr %s318, 8
      %s320 = scalar_lea.vmem %s3, %s319
      // Predicated region
      $region33: #{patch_embedding_3d.1} parent=31 // pred_check
        %p321 = pneg %p100
      $region34: #{patch_embedding_3d.1} parent=31 // pred_check_branch
        %323 = sbr.rel (%p321) target = $region36
      $region35: #{patch_embedding_3d.1} parent=31 // pred_region
        %s324 = smul.u32 4, %s14
      $region36: #{patch_embedding_3d.1} parent=31 // pred_fallthru
        _
    $region32: #{patch_embedding_3d.1} parent=5 // pred_fallthru
      _
    %p325 = scmp.le.s32.totalorder 2, %s9
    // Predicated region
    $region37: #{patch_embedding_3d.1} parent=5 // pred_check
      %p326 = pneg %p325
    $region38: #{patch_embedding_3d.1} parent=5 // pred_check_branch
      %328 = sbr.rel (%p326) target = $region40
    $region39: #{patch_embedding_3d.1} parent=5 // pred_region
      %s329 = ssub.s32 %s9, 2
      // Predicated region
      $region41: #{patch_embedding_3d.1} parent=39 // pred_check
        %p330 = pneg %p106
      $region42: #{patch_embedding_3d.1} parent=39 // pred_check_branch
        %332 = sbr.rel (%p330) target = $region44
      $region43: #{patch_embedding_3d.1} parent=39 // pred_region
        %s333 = smul.u32 4, %s15
        %p334 = scmp.lt.s32.totalorder %s333, 15
        %s335 = scalar_select %p334, %s333, 15
        %s336 = smul.addr %s335, 8
        %s337 = scalar_lea.vmem %s3, %s336
      $region44: #{patch_embedding_3d.1} parent=39 // pred_fallthru
        _
    $region40: #{patch_embedding_3d.1} parent=5 // pred_fallthru
      _
  $region6: #{patch_embedding_3d.1} parent=0 // loop_footer
    %s13 = sadd.s32 1, %s9
  $region7: #{patch_embedding_3d.1} parent=0 // loop_footer_branch
    %8 = sbr.rel target = $region3
  $region8: #{patch_embedding_3d.1} parent=0 // loop_exit
    _

</llo_original>
